<compile_context>
chip_gen: v7x
topology: tpu7x:2x2x1
jax: 0.10.0
libtpu: 0.0.40
codegen_flags: <defaults>
</compile_context>

<pallas_src>
import jax
import jax.numpy as jnp
import numpy as np
from jax.experimental import pallas as pl
from jax.experimental.pallas import tpu as pltpu

# Stand-ins for resnet.C constants (small synthetic sizes).
FILTERS = 8           # C.FILTERS
BOARD_SIZE = 8        # C.BOARD_SIZE
BATCH = 8             # >= 8 fills the 8 vreg sublanes
HW = BOARD_SIZE * BOARD_SIZE          # 64
IN_FEATURES = 2 * HW                  # 128  (linear in)
OUT_FEATURES = HW                     # 64   (linear out)
BN_EPS = 1e-5


# ---------------------------------------------------------------------------
# Fused kernel: 1x1 conv + BatchNorm2d(train) + flatten + Linear + Softmax
# ---------------------------------------------------------------------------
def policy_head_kernel(x_ref, wl_ref, colsum_ref, bl_ref, wc_ref, gamma_ref,
                       beta_ref, out_ref):
    """
    x_ref:      (C, N, HW)  VMEM  input, channel-major so slabs are leading-axis
    wl_ref:     (2, HW, HW) VMEM  linear weight, split per conv output channel
    colsum_ref: (2, HW)     VMEM  per-channel column sums of wl (sum over k)
    bl_ref:     (1, HW)     VMEM  linear bias
    wc_ref:     (2, C)      SMEM  1x1 conv weight (scalars)
    gamma_ref:  (2,)        SMEM  BN weight
    beta_ref:   (2,)        SMEM  BN bias
    out_ref:    (N, HW)     VMEM  softmax probabilities
    """
    n_cin, n_batch, hw = x_ref.shape
    inv_count = 1.0 / float(n_batch * hw)

    # Load each (N, HW) input-channel slab once (free leading-axis slices).
    xs = [x_ref[ci] for ci in range(n_cin)]

    # 1x1 conv as an unrolled scalar-broadcast FMA tree: no per-sample loop,
    # no concat/relayout; conv[c] is directly an (N, HW) slab.
    # (Conv bias omitted: training-mode BN batch-mean subtraction cancels it.)
    conv = []
    for c in range(2):
        acc = wc_ref[c, 0] * xs[0]
        for ci in range(1, n_cin):
            acc = acc + wc_ref[c, ci] * xs[ci]
        conv.append(acc)

    # Reassociated BN+Linear: U_c depends only on conv, so the MXU matmuls
    # issue immediately and overlap the statistics reduction / rsqrt below.
    u0 = jnp.dot(conv[0], wl_ref[0], preferred_element_type=jnp.float32)
    u1 = jnp.dot(conv[1], wl_ref[1], preferred_element_type=jnp.float32)

    # Per-channel batch statistics (training-mode BN, biased variance,
    # two-pass/centered form for numerical robustness).
    scales, shifts = [], []
    for c in range(2):
        mean = jnp.sum(conv[c]) * inv_count
        d = conv[c] - mean
        var = jnp.sum(d * d) * inv_count
        scale = gamma_ref[c] * jax.lax.rsqrt(var + BN_EPS)
        shift = beta_ref[c] - mean * scale
        scales.append(scale)
        shifts.append(shift)

    # logits = sum_c (scale_c*conv_c + shift_c) @ wl[c] + bl
    #        = sum_c scale_c*U_c + sum_c shift_c*colsum(wl[c]) + bl
    bias_row = (shifts[0] * colsum_ref[0:1, :]
                + shifts[1] * colsum_ref[1:2, :]
                + bl_ref[...])                                   # (1, HW)
    logits = scales[0] * u0 + scales[1] * u1 + bias_row          # (N, HW)

    # Softmax over dim=1 (exact reciprocal keeps the 1e-5 atol budget).
    m = jnp.max(logits, axis=1, keepdims=True)
    e = jnp.exp(logits - m)
    denom = jnp.sum(e, axis=1, keepdims=True)
    out_ref[...] = e * pl.reciprocal(denom, approx=False)


@jax.jit
def policy_head(x, params):
    wc = params["wc"]
    gamma = params["gamma"]
    beta = params["beta"]
    wl = params["wl"]
    bl = params["bl"]

    n, c, h, w = x.shape
    hw = h * w

    # Tiny wrapper-side layout plumbing: an N*C*HW*4-byte transpose so each
    # input channel is a leading-axis (N, HW) slab, free reshapes, and a
    # (2, HW) column-sum of the linear weight for the reassociated BN shift.
    x_t = jnp.transpose(x.reshape(n, c, hw), (1, 0, 2))    # (C, N, HW)
    wl3 = wl.reshape(2, hw, hw)                            # wl[c*HW+k, m] = wl3[c,k,m]
    colsum = jnp.sum(wl3, axis=1)                          # (2, HW)

    flops = 2 * n * hw * (2 * c + 2 * hw) + 10 * n * hw
    bytes_accessed = 4 * (x_t.size + wl3.size + colsum.size + bl.size
                          + wc.size + gamma.size + beta.size + n * hw)

    return pl.pallas_call(
        policy_head_kernel,
        out_shape=jax.ShapeDtypeStruct((n, hw), jnp.float32),
        grid=(1,),
        in_specs=[
            pl.BlockSpec((c, n, hw), lambda i: (0, 0, 0)),          # x (C,N,HW)
            pl.BlockSpec((2, hw, hw), lambda i: (0, 0, 0)),         # wl
            pl.BlockSpec((2, hw), lambda i: (0, 0)),                # colsum(wl)
            pl.BlockSpec((1, hw), lambda i: (0, 0)),                # bl
            pl.BlockSpec(memory_space=pltpu.MemorySpace.SMEM),      # wc
            pl.BlockSpec(memory_space=pltpu.MemorySpace.SMEM),      # gamma
            pl.BlockSpec(memory_space=pltpu.MemorySpace.SMEM),      # beta
        ],
        out_specs=pl.BlockSpec((n, hw), lambda i: (0, 0)),
        compiler_params=pltpu.CompilerParams(
            dimension_semantics=("arbitrary",)),
        cost_estimate=pl.CostEstimate(
            flops=flops,
            transcendentals=n * hw,
            bytes_accessed=bytes_accessed),
    )(x_t, wl3, colsum, bl, wc, gamma, beta)


def reference(x, params):
    """Pure-JAX reference mirroring the PyTorch forward (training-mode BN,
    including the conv bias that the kernel folds away)."""
    conv = jnp.einsum("oc,nchw->nohw", params["wc"], x) \
        + params["bc"].reshape(1, 2, 1, 1)
    mean = conv.mean(axis=(0, 2, 3), keepdims=True)
    var = ((conv - mean) ** 2).mean(axis=(0, 2, 3), keepdims=True)
    norm = (conv - mean) * jax.lax.rsqrt(var + BN_EPS)
    norm = norm * params["gamma"].reshape(1, 2, 1, 1) \
        + params["beta"].reshape(1, 2, 1, 1)
    flat = norm.reshape(x.shape[0], -1)
    logits = flat @ params["wl"] + params["bl"]
    return jax.nn.softmax(logits, axis=1)


if __name__ == "__main__":
    key = jax.random.PRNGKey(0)
    k1, k2, k3, k4, k5, k6, k7 = jax.random.split(key, 7)

    # Shapes from PolicyHead.__init__:
    #   conv.weight (2, FILTERS, 1, 1) -> stored squeezed as (2, FILTERS) in SMEM
    #   conv.bias   (2,)               -> reference-only (cancelled by train BN)
    #   bn.weight/bias (2,)            -> SMEM scalars
    #   linear.weight (HW, 2*HW)       -> stored transposed (2*HW, HW)
    #   linear.bias   (HW,)            -> stored as (1, HW)
    params = {
        "wc":    jax.random.normal(k1, (2, FILTERS), jnp.float32) * 0.2,
        "bc":    jax.random.normal(k2, (2,), jnp.float32) * 0.1,
        "gamma": 1.0 + 0.1 * jax.random.normal(k3, (2,), jnp.float32),
        "beta":  0.1 * jax.random.normal(k4, (2,), jnp.float32),
        "wl":    jax.random.normal(k5, (IN_FEATURES, OUT_FEATURES),
                                   jnp.float32) * 0.05,
        "bl":    0.1 * jax.random.normal(k6, (1, OUT_FEATURES), jnp.float32),
    }
    x = jax.random.normal(k7, (BATCH, FILTERS, BOARD_SIZE, BOARD_SIZE),
                          jnp.float32)

    out = jax.block_until_ready(policy_head(x, params))
    ref = jax.block_until_ready(reference(x, params))

    assert out.shape == (BATCH, BOARD_SIZE ** 2)
    np.testing.assert_allclose(np.asarray(out), np.asarray(ref),
                               atol=1e-5, rtol=1e-4)
    # rows of a softmax sum to 1
    np.testing.assert_allclose(np.asarray(out).sum(axis=1), 1.0, atol=1e-5)

    print("KERNEL_OK")
</pallas_src>

<mosaic_0001>
module attributes {stable_mosaic.version = 11 : i64} {
  func.func @policy_head_kernel(%arg0: i32, %arg1: memref<8x8x64xf32, #tpu.memory_space<vmem>>, %arg2: memref<2x64x64xf32, #tpu.memory_space<vmem>>, %arg3: memref<2x64xf32, #tpu.memory_space<vmem>>, %arg4: memref<1x64xf32, #tpu.memory_space<vmem>>, %arg5: memref<2x8xf32, #tpu.memory_space<smem>>, %arg6: memref<2xf32, #tpu.memory_space<smem>>, %arg7: memref<2xf32, #tpu.memory_space<smem>>, %arg8: memref<8x64xf32, #tpu.memory_space<vmem>>) attributes {dimension_semantics = [#tpu.dimension_semantics<arbitrary>], iteration_bounds = array<i64: 1>, scalar_prefetch = 0 : i64, scratch_operands = 0 : i64, tpu.core_type = #tpu.core_type<tc>, window_params = [{pipeline_mode = #tpu.pipeline_mode<synchronous>, transform_indices = @transform_0, window_bounds = array<i64: 8, 8, 64>}, {pipeline_mode = #tpu.pipeline_mode<synchronous>, transform_indices = @transform_1, window_bounds = array<i64: 2, 64, 64>}, {pipeline_mode = #tpu.pipeline_mode<synchronous>, transform_indices = @transform_2, window_bounds = array<i64: 2, 64>}, {pipeline_mode = #tpu.pipeline_mode<synchronous>, transform_indices = @transform_3, window_bounds = array<i64: 1, 64>}, {transform_indices = @transform_4, window_bounds = array<i64: 2, 8>}, {transform_indices = @transform_5, window_bounds = array<i64: 2>}, {transform_indices = @transform_6, window_bounds = array<i64: 2>}, {pipeline_mode = #tpu.pipeline_mode<synchronous>, transform_indices = @transform_7, window_bounds = array<i64: 8, 64>}]} {
    %c0 = arith.constant 0 : index
    %c0_0 = arith.constant 0 : index
    %c0_1 = arith.constant 0 : index
    %0 = vector.load %arg1[%c0, %c0_0, %c0_1] : memref<8x8x64xf32, #tpu.memory_space<vmem>>, vector<1x8x64xf32>
    %1 = vector.shape_cast %0 : vector<1x8x64xf32> to vector<8x64xf32>
    %c1 = arith.constant 1 : index
    %c0_2 = arith.constant 0 : index
    %c0_3 = arith.constant 0 : index
    %2 = vector.load %arg1[%c1, %c0_2, %c0_3] : memref<8x8x64xf32, #tpu.memory_space<vmem>>, vector<1x8x64xf32>
    %3 = vector.shape_cast %2 : vector<1x8x64xf32> to vector<8x64xf32>
    %c2 = arith.constant 2 : index
    %c0_4 = arith.constant 0 : index
    %c0_5 = arith.constant 0 : index
    %4 = vector.load %arg1[%c2, %c0_4, %c0_5] : memref<8x8x64xf32, #tpu.memory_space<vmem>>, vector<1x8x64xf32>
    %5 = vector.shape_cast %4 : vector<1x8x64xf32> to vector<8x64xf32>
    %c3 = arith.constant 3 : index
    %c0_6 = arith.constant 0 : index
    %c0_7 = arith.constant 0 : index
    %6 = vector.load %arg1[%c3, %c0_6, %c0_7] : memref<8x8x64xf32, #tpu.memory_space<vmem>>, vector<1x8x64xf32>
    %7 = vector.shape_cast %6 : vector<1x8x64xf32> to vector<8x64xf32>
    %c4 = arith.constant 4 : index
    %c0_8 = arith.constant 0 : index
    %c0_9 = arith.constant 0 : index
    %8 = vector.load %arg1[%c4, %c0_8, %c0_9] : memref<8x8x64xf32, #tpu.memory_space<vmem>>, vector<1x8x64xf32>
    %9 = vector.shape_cast %8 : vector<1x8x64xf32> to vector<8x64xf32>
    %c5 = arith.constant 5 : index
    %c0_10 = arith.constant 0 : index
    %c0_11 = arith.constant 0 : index
    %10 = vector.load %arg1[%c5, %c0_10, %c0_11] : memref<8x8x64xf32, #tpu.memory_space<vmem>>, vector<1x8x64xf32>
    %11 = vector.shape_cast %10 : vector<1x8x64xf32> to vector<8x64xf32>
    %c6 = arith.constant 6 : index
    %c0_12 = arith.constant 0 : index
    %c0_13 = arith.constant 0 : index
    %12 = vector.load %arg1[%c6, %c0_12, %c0_13] : memref<8x8x64xf32, #tpu.memory_space<vmem>>, vector<1x8x64xf32>
    %13 = vector.shape_cast %12 : vector<1x8x64xf32> to vector<8x64xf32>
    %c7 = arith.constant 7 : index
    %c0_14 = arith.constant 0 : index
    %c0_15 = arith.constant 0 : index
    %14 = vector.load %arg1[%c7, %c0_14, %c0_15] : memref<8x8x64xf32, #tpu.memory_space<vmem>>, vector<1x8x64xf32>
    %15 = vector.shape_cast %14 : vector<1x8x64xf32> to vector<8x64xf32>
    %c0_16 = arith.constant 0 : index
    %c0_17 = arith.constant 0 : index
    %16 = memref.load %arg5[%c0_16, %c0_17] : memref<2x8xf32, #tpu.memory_space<smem>>
    %17 = vector.broadcast %16 : f32 to vector<8x64xf32>
    %18 = arith.mulf %17, %1 : vector<8x64xf32>
    %c0_18 = arith.constant 0 : index
    %c1_19 = arith.constant 1 : index
    %19 = memref.load %arg5[%c0_18, %c1_19] : memref<2x8xf32, #tpu.memory_space<smem>>
    %20 = vector.broadcast %19 : f32 to vector<8x64xf32>
    %21 = arith.mulf %20, %3 : vector<8x64xf32>
    %22 = arith.addf %18, %21 : vector<8x64xf32>
    %c0_20 = arith.constant 0 : index
    %c2_21 = arith.constant 2 : index
    %23 = memref.load %arg5[%c0_20, %c2_21] : memref<2x8xf32, #tpu.memory_space<smem>>
    %24 = vector.broadcast %23 : f32 to vector<8x64xf32>
    %25 = arith.mulf %24, %5 : vector<8x64xf32>
    %26 = arith.addf %22, %25 : vector<8x64xf32>
    %c0_22 = arith.constant 0 : index
    %c3_23 = arith.constant 3 : index
    %27 = memref.load %arg5[%c0_22, %c3_23] : memref<2x8xf32, #tpu.memory_space<smem>>
    %28 = vector.broadcast %27 : f32 to vector<8x64xf32>
    %29 = arith.mulf %28, %7 : vector<8x64xf32>
    %30 = arith.addf %26, %29 : vector<8x64xf32>
    %c0_24 = arith.constant 0 : index
    %c4_25 = arith.constant 4 : index
    %31 = memref.load %arg5[%c0_24, %c4_25] : memref<2x8xf32, #tpu.memory_space<smem>>
    %32 = vector.broadcast %31 : f32 to vector<8x64xf32>
    %33 = arith.mulf %32, %9 : vector<8x64xf32>
    %34 = arith.addf %30, %33 : vector<8x64xf32>
    %c0_26 = arith.constant 0 : index
    %c5_27 = arith.constant 5 : index
    %35 = memref.load %arg5[%c0_26, %c5_27] : memref<2x8xf32, #tpu.memory_space<smem>>
    %36 = vector.broadcast %35 : f32 to vector<8x64xf32>
    %37 = arith.mulf %36, %11 : vector<8x64xf32>
    %38 = arith.addf %34, %37 : vector<8x64xf32>
    %c0_28 = arith.constant 0 : index
    %c6_29 = arith.constant 6 : index
    %39 = memref.load %arg5[%c0_28, %c6_29] : memref<2x8xf32, #tpu.memory_space<smem>>
    %40 = vector.broadcast %39 : f32 to vector<8x64xf32>
    %41 = arith.mulf %40, %13 : vector<8x64xf32>
    %42 = arith.addf %38, %41 : vector<8x64xf32>
    %c0_30 = arith.constant 0 : index
    %c7_31 = arith.constant 7 : index
    %43 = memref.load %arg5[%c0_30, %c7_31] : memref<2x8xf32, #tpu.memory_space<smem>>
    %44 = vector.broadcast %43 : f32 to vector<8x64xf32>
    %45 = arith.mulf %44, %15 : vector<8x64xf32>
    %46 = arith.addf %42, %45 : vector<8x64xf32>
    %c1_32 = arith.constant 1 : index
    %c0_33 = arith.constant 0 : index
    %47 = memref.load %arg5[%c1_32, %c0_33] : memref<2x8xf32, #tpu.memory_space<smem>>
    %48 = vector.broadcast %47 : f32 to vector<8x64xf32>
    %49 = arith.mulf %48, %1 : vector<8x64xf32>
    %c1_34 = arith.constant 1 : index
    %c1_35 = arith.constant 1 : index
    %50 = memref.load %arg5[%c1_34, %c1_35] : memref<2x8xf32, #tpu.memory_space<smem>>
    %51 = vector.broadcast %50 : f32 to vector<8x64xf32>
    %52 = arith.mulf %51, %3 : vector<8x64xf32>
    %53 = arith.addf %49, %52 : vector<8x64xf32>
    %c1_36 = arith.constant 1 : index
    %c2_37 = arith.constant 2 : index
    %54 = memref.load %arg5[%c1_36, %c2_37] : memref<2x8xf32, #tpu.memory_space<smem>>
    %55 = vector.broadcast %54 : f32 to vector<8x64xf32>
    %56 = arith.mulf %55, %5 : vector<8x64xf32>
    %57 = arith.addf %53, %56 : vector<8x64xf32>
    %c1_38 = arith.constant 1 : index
    %c3_39 = arith.constant 3 : index
    %58 = memref.load %arg5[%c1_38, %c3_39] : memref<2x8xf32, #tpu.memory_space<smem>>
    %59 = vector.broadcast %58 : f32 to vector<8x64xf32>
    %60 = arith.mulf %59, %7 : vector<8x64xf32>
    %61 = arith.addf %57, %60 : vector<8x64xf32>
    %c1_40 = arith.constant 1 : index
    %c4_41 = arith.constant 4 : index
    %62 = memref.load %arg5[%c1_40, %c4_41] : memref<2x8xf32, #tpu.memory_space<smem>>
    %63 = vector.broadcast %62 : f32 to vector<8x64xf32>
    %64 = arith.mulf %63, %9 : vector<8x64xf32>
    %65 = arith.addf %61, %64 : vector<8x64xf32>
    %c1_42 = arith.constant 1 : index
    %c5_43 = arith.constant 5 : index
    %66 = memref.load %arg5[%c1_42, %c5_43] : memref<2x8xf32, #tpu.memory_space<smem>>
    %67 = vector.broadcast %66 : f32 to vector<8x64xf32>
    %68 = arith.mulf %67, %11 : vector<8x64xf32>
    %69 = arith.addf %65, %68 : vector<8x64xf32>
    %c1_44 = arith.constant 1 : index
    %c6_45 = arith.constant 6 : index
    %70 = memref.load %arg5[%c1_44, %c6_45] : memref<2x8xf32, #tpu.memory_space<smem>>
    %71 = vector.broadcast %70 : f32 to vector<8x64xf32>
    %72 = arith.mulf %71, %13 : vector<8x64xf32>
    %73 = arith.addf %69, %72 : vector<8x64xf32>
    %c1_46 = arith.constant 1 : index
    %c7_47 = arith.constant 7 : index
    %74 = memref.load %arg5[%c1_46, %c7_47] : memref<2x8xf32, #tpu.memory_space<smem>>
    %75 = vector.broadcast %74 : f32 to vector<8x64xf32>
    %76 = arith.mulf %75, %15 : vector<8x64xf32>
    %77 = arith.addf %73, %76 : vector<8x64xf32>
    %c0_48 = arith.constant 0 : index
    %c0_49 = arith.constant 0 : index
    %c0_50 = arith.constant 0 : index
    %78 = vector.load %arg2[%c0_48, %c0_49, %c0_50] : memref<2x64x64xf32, #tpu.memory_space<vmem>>, vector<1x64x64xf32>
    %79 = vector.shape_cast %78 : vector<1x64x64xf32> to vector<64x64xf32>
    %cst = arith.constant dense<0.000000e+00> : vector<8x64xf32>
    %80 = tpu.matmul %46, %79, %cst {dimension_numbers = #tpu.dot_dimension_numbers<[1], [0], [0], [1], [0, 0, 1, 1], [], []>} : vector<8x64xf32>, vector<64x64xf32>, vector<8x64xf32> -> vector<8x64xf32>
    %c1_51 = arith.constant 1 : index
    %c0_52 = arith.constant 0 : index
    %c0_53 = arith.constant 0 : index
    %81 = vector.load %arg2[%c1_51, %c0_52, %c0_53] : memref<2x64x64xf32, #tpu.memory_space<vmem>>, vector<1x64x64xf32>
    %82 = vector.shape_cast %81 : vector<1x64x64xf32> to vector<64x64xf32>
    %cst_54 = arith.constant dense<0.000000e+00> : vector<8x64xf32>
    %83 = tpu.matmul %77, %82, %cst_54 {dimension_numbers = #tpu.dot_dimension_numbers<[1], [0], [0], [1], [0, 0, 1, 1], [], []>} : vector<8x64xf32>, vector<64x64xf32>, vector<8x64xf32> -> vector<8x64xf32>
    %84 = vector.shape_cast %46 : vector<8x64xf32> to vector<1x8x64xf32>
    %cst_55 = arith.constant dense<0.000000e+00> : vector<1xf32>
    %85 = vector.multi_reduction <add>, %84, %cst_55 [1, 2] : vector<1x8x64xf32> to vector<1xf32>
    %86 = vector.shape_cast %85 : vector<1xf32> to vector<1x1x1xf32>
    %87 = vector.extract %86[0, 0, 0] : f32 from vector<1x1x1xf32>
    %cst_56 = arith.constant 0.001953125 : f32
    %88 = arith.mulf %87, %cst_56 : f32
    %89 = vector.broadcast %88 : f32 to vector<8x64xf32>
    %90 = arith.subf %46, %89 : vector<8x64xf32>
    %91 = arith.mulf %90, %90 : vector<8x64xf32>
    %92 = vector.shape_cast %91 : vector<8x64xf32> to vector<1x8x64xf32>
    %cst_57 = arith.constant dense<0.000000e+00> : vector<1xf32>
    %93 = vector.multi_reduction <add>, %92, %cst_57 [1, 2] : vector<1x8x64xf32> to vector<1xf32>
    %94 = vector.shape_cast %93 : vector<1xf32> to vector<1x1x1xf32>
    %95 = vector.extract %94[0, 0, 0] : f32 from vector<1x1x1xf32>
    %cst_58 = arith.constant 0.001953125 : f32
    %96 = arith.mulf %95, %cst_58 : f32
    %c0_59 = arith.constant 0 : index
    %97 = memref.load %arg6[%c0_59] : memref<2xf32, #tpu.memory_space<smem>>
    %cst_60 = arith.constant 9.99999974E-6 : f32
    %98 = arith.addf %96, %cst_60 : f32
    %99 = math.rsqrt %98 : f32
    %100 = arith.mulf %97, %99 : f32
    %c0_61 = arith.constant 0 : index
    %101 = memref.load %arg7[%c0_61] : memref<2xf32, #tpu.memory_space<smem>>
    %102 = arith.mulf %88, %100 : f32
    %103 = arith.subf %101, %102 : f32
    %104 = vector.shape_cast %77 : vector<8x64xf32> to vector<1x8x64xf32>
    %cst_62 = arith.constant dense<0.000000e+00> : vector<1xf32>
    %105 = vector.multi_reduction <add>, %104, %cst_62 [1, 2] : vector<1x8x64xf32> to vector<1xf32>
    %106 = vector.shape_cast %105 : vector<1xf32> to vector<1x1x1xf32>
    %107 = vector.extract %106[0, 0, 0] : f32 from vector<1x1x1xf32>
    %cst_63 = arith.constant 0.001953125 : f32
    %108 = arith.mulf %107, %cst_63 : f32
    %109 = vector.broadcast %108 : f32 to vector<8x64xf32>
    %110 = arith.subf %77, %109 : vector<8x64xf32>
    %111 = arith.mulf %110, %110 : vector<8x64xf32>
    %112 = vector.shape_cast %111 : vector<8x64xf32> to vector<1x8x64xf32>
    %cst_64 = arith.constant dense<0.000000e+00> : vector<1xf32>
    %113 = vector.multi_reduction <add>, %112, %cst_64 [1, 2] : vector<1x8x64xf32> to vector<1xf32>
    %114 = vector.shape_cast %113 : vector<1xf32> to vector<1x1x1xf32>
    %115 = vector.extract %114[0, 0, 0] : f32 from vector<1x1x1xf32>
    %cst_65 = arith.constant 0.001953125 : f32
    %116 = arith.mulf %115, %cst_65 : f32
    %c1_66 = arith.constant 1 : index
    %117 = memref.load %arg6[%c1_66] : memref<2xf32, #tpu.memory_space<smem>>
    %cst_67 = arith.constant 9.99999974E-6 : f32
    %118 = arith.addf %116, %cst_67 : f32
    %119 = math.rsqrt %118 : f32
    %120 = arith.mulf %117, %119 : f32
    %c1_68 = arith.constant 1 : index
    %121 = memref.load %arg7[%c1_68] : memref<2xf32, #tpu.memory_space<smem>>
    %122 = arith.mulf %108, %120 : f32
    %123 = arith.subf %121, %122 : f32
    %c0_69 = arith.constant 0 : index
    %c0_70 = arith.constant 0 : index
    %124 = vector.load %arg3[%c0_69, %c0_70] : memref<2x64xf32, #tpu.memory_space<vmem>>, vector<1x64xf32>
    %125 = vector.broadcast %103 : f32 to vector<1x64xf32>
    %126 = arith.mulf %125, %124 : vector<1x64xf32>
    %c1_71 = arith.constant 1 : index
    %c0_72 = arith.constant 0 : index
    %127 = vector.load %arg3[%c1_71, %c0_72] : memref<2x64xf32, #tpu.memory_space<vmem>>, vector<1x64xf32>
    %128 = vector.broadcast %123 : f32 to vector<1x64xf32>
    %129 = arith.mulf %128, %127 : vector<1x64xf32>
    %130 = arith.addf %126, %129 : vector<1x64xf32>
    %c0_73 = arith.constant 0 : index
    %c0_74 = arith.constant 0 : index
    %131 = vector.load %arg4[%c0_73, %c0_74] : memref<1x64xf32, #tpu.memory_space<vmem>>, vector<1x64xf32>
    %132 = arith.addf %130, %131 : vector<1x64xf32>
    %133 = vector.broadcast %100 : f32 to vector<8x64xf32>
    %134 = arith.mulf %133, %80 : vector<8x64xf32>
    %135 = vector.broadcast %120 : f32 to vector<8x64xf32>
    %136 = arith.mulf %135, %83 : vector<8x64xf32>
    %137 = arith.addf %134, %136 : vector<8x64xf32>
    %138 = vector.broadcast %132 : vector<1x64xf32> to vector<8x64xf32>
    %139 = arith.addf %137, %138 : vector<8x64xf32>
    %cst_75 = arith.constant dense<0xFF800000> : vector<8xf32>
    %140 = vector.multi_reduction <maximumf>, %139, %cst_75 [1] : vector<8x64xf32> to vector<8xf32>
    %141 = vector.shape_cast %140 : vector<8xf32> to vector<8x1xf32>
    %142 = vector.broadcast %141 : vector<8x1xf32> to vector<8x64xf32>
    %143 = arith.subf %139, %142 : vector<8x64xf32>
    %144 = math.exp %143 : vector<8x64xf32>
    %cst_76 = arith.constant dense<0.000000e+00> : vector<8xf32>
    %145 = vector.multi_reduction <add>, %144, %cst_76 [1] : vector<8x64xf32> to vector<8xf32>
    %146 = vector.shape_cast %145 : vector<8xf32> to vector<8x1xf32>
    %147 = tpu.reciprocal %146 : vector<8x1xf32> -> vector<8x1xf32>
    %148 = vector.broadcast %147 : vector<8x1xf32> to vector<8x64xf32>
    %149 = arith.mulf %144, %148 : vector<8x64xf32>
    %c0_77 = arith.constant 0 : index
    %c0_78 = arith.constant 0 : index
    %150 = vector.load %arg8[%c0_77, %c0_78] : memref<8x64xf32, #tpu.memory_space<vmem>>, vector<8x64xf32>
    tpu.vector_store %arg8[%c0_77, %c0_78], %149 {strides = array<i32>} : memref<8x64xf32, #tpu.memory_space<vmem>>, vector<8x64xf32>,
    return
  }
  func.func @transform_0(%arg0: i32) -> (i32, i32, i32) {
    %c0_i32 = arith.constant 0 : i32
    %c0_i32_0 = arith.constant 0 : i32
    %c0_i32_1 = arith.constant 0 : i32
    %c0_i32_2 = arith.constant 0 : i32
    return %c0_i32, %c0_i32_0, %c0_i32_1 : i32, i32, i32
  }
  func.func @transform_1(%arg0: i32) -> (i32, i32, i32) {
    %c0_i32 = arith.constant 0 : i32
    %c0_i32_0 = arith.constant 0 : i32
    %c0_i32_1 = arith.constant 0 : i32
    %c0_i32_2 = arith.constant 0 : i32
    return %c0_i32, %c0_i32_0, %c0_i32_1 : i32, i32, i32
  }
  func.func @transform_2(%arg0: i32) -> (i32, i32) {
    %c0_i32 = arith.constant 0 : i32
    %c0_i32_0 = arith.constant 0 : i32
    %c0_i32_1 = arith.constant 0 : i32
    return %c0_i32, %c0_i32_0 : i32, i32
  }
  func.func @transform_3(%arg0: i32) -> (i32, i32) {
    %c0_i32 = arith.constant 0 : i32
    %c0_i32_0 = arith.constant 0 : i32
    %c0_i32_1 = arith.constant 0 : i32
    return %c0_i32, %c0_i32_0 : i32, i32
  }
  func.func @transform_4(%arg0: i32) -> (i32, i32) {
    %c0_i32 = arith.constant 0 : i32
    %c0_i32_0 = arith.constant 0 : i32
    %c0_i32_1 = arith.constant 0 : i32
    return %c0_i32, %c0_i32_0 : i32, i32
  }
  func.func @transform_5(%arg0: i32) -> i32 {
    %c0_i32 = arith.constant 0 : i32
    %c0_i32_0 = arith.constant 0 : i32
    return %c0_i32 : i32
  }
  func.func @transform_6(%arg0: i32) -> i32 {
    %c0_i32 = arith.constant 0 : i32
    %c0_i32_0 = arith.constant 0 : i32
    return %c0_i32 : i32
  }
  func.func @transform_7(%arg0: i32) -> (i32, i32) {
    %c0_i32 = arith.constant 0 : i32
    %c0_i32_0 = arith.constant 0 : i32
    %c0_i32_1 = arith.constant 0 : i32
    return %c0_i32, %c0_i32_0 : i32, i32
  }
}

</mosaic_0001>

<llo_original>
// kernel: policy_head.1
$region0: #{policy_head.1}
  #allocation0 [shape = 'u32[]', space=smem, size = 0x4, offset = 0x4, fixed_abs, tag = 'smem constant byte address 0x4 - core index']
  #allocation1 [shape = 'u32[144,128]{1,0:T(1,128)}', space=vmem, size = 0x12000, scoped, tag = 'internal scratch']
  %s0 = inlined_call_operand.vmem [shape: f32[8,8,64], index: 0, kind: input, shape index: {}]
  %s1 = inlined_call_operand.vmem [shape: f32[2,64,64], index: 1, kind: input, shape index: {}]
  %s2 = inlined_call_operand.vmem [shape: f32[2,64], index: 2, kind: input, shape index: {}]
  %s3 = inlined_call_operand.vmem [shape: f32[1,64], index: 3, kind: input, shape index: {}]
  %s4 = inlined_call_operand.vmem [shape: f32[2,8], index: 4, kind: input, shape index: {}]
  %s5 = inlined_call_operand.vmem [shape: f32[2], index: 5, kind: input, shape index: {}]
  %s6 = inlined_call_operand.vmem [shape: f32[2], index: 6, kind: input, shape index: {}]
  %s7 = inlined_call_operand.hbm [shape: f32[8,64], index: 7, kind: output, shape index: {}]
  %s8 = sld [smem:[#allocation0]]
  $region50: #{policy_head.1} parent=0
    _
  %s10 = ssub.s32 1, %s8
  %s11 = scalar_select 0, %s10, %s8
  $region1: #{policy_head.1} parent=0
    #allocation2 [shape = 'u8[1024]{0}', space=smem, size = 0x400, scoped, tag = 'input window, operand 4, single buffered']
    #allocation3 [shape = 's32[1]{0}', space=sflag, size = 0x4, scoped, tag = 'scoped memory for policy_head.1']
    #allocation4 [shape = 's32[1]{0}', space=sflag, size = 0x4, scoped, tag = 'scoped memory for policy_head.1']
    #allocation5 [shape = 'u8[512]{0}', space=smem, size = 0x200, scoped, tag = 'input window, operand 5, single buffered']
    #allocation6 [shape = 's32[1]{0}', space=sflag, size = 0x4, scoped, tag = 'scoped memory for policy_head.1']
    #allocation7 [shape = 'u8[512]{0}', space=smem, size = 0x200, scoped, tag = 'input window, operand 6, single buffered']
    #allocation8 [shape = 'u8[4096]{0}', space=vmem, size = 0x1000, scoped, tag = 'output window, operand 0, single buffered']
    %12 = vsyncpa [#allocation4], 0
    %13 = vsyncpa [#allocation6], 0
    %14 = vsyncpa [#allocation3], 0
    // Predicated region
    $region2: #{policy_head.1} parent=1 // pred_check
      _
    $region3: #{policy_head.1} parent=1 // pred_check_branch
      %16 = sbr.rel (0) target = $region5
    $region4: #{policy_head.1} parent=1 // pred_region
      _
    $region5: #{policy_head.1} parent=1 // pred_fallthru
      _
    // Predicated region
    $region6: #{policy_head.1} parent=1 // pred_check
      _
    $region7: #{policy_head.1} parent=1 // pred_check_branch
      %18 = sbr.rel (0) target = $region9
    $region8: #{policy_head.1} parent=1 // pred_region
      _
    $region9: #{policy_head.1} parent=1 // pred_fallthru
      _
    // Predicated region
    $region10: #{policy_head.1} parent=1 // pred_check
      _
    $region11: #{policy_head.1} parent=1 // pred_check_branch
      %20 = sbr.rel (0) target = $region13
    $region12: #{policy_head.1} parent=1 // pred_region
      _
    $region13: #{policy_head.1} parent=1 // pred_fallthru
      _
    // Predicated region
    $region14: #{policy_head.1} parent=1 // pred_check
      _
    $region15: #{policy_head.1} parent=1 // pred_check_branch
      %22 = sbr.rel (0) target = $region17
    $region16: #{policy_head.1} parent=1 // pred_region
      _
    $region17: #{policy_head.1} parent=1 // pred_fallthru
      _
    // Predicated region
    $region18: #{policy_head.1} parent=1 // pred_check
      _
    $region19: #{policy_head.1} parent=1 // pred_check_branch
      %24 = sbr.rel (0) target = $region21
    $region20: #{policy_head.1} parent=1 // pred_region
      %s26 = ssub.s32 32, 32
      %27 = vsyncadd [#allocation4], %s26
      %s29 = sshll.u32 %s4, 4
      %s30 = int_to_ptr.vmem [resolvable:$true] %s29
      %32 = dma.vmem_to_smem %s30, 32, [#allocation2], [#allocation4]
    $region21: #{policy_head.1} parent=1 // pred_fallthru
      _
    // Predicated region
    $region22: #{policy_head.1} parent=1 // pred_check
      _
    $region23: #{policy_head.1} parent=1 // pred_check_branch
      %34 = sbr.rel (0) target = $region25
    $region24: #{policy_head.1} parent=1 // pred_region
      %s36 = ssub.s32 16, 16
      %37 = vsyncadd [#allocation6], %s36
      %s39 = sshll.u32 %s5, 4
      %s40 = int_to_ptr.vmem [resolvable:$true] %s39
      %42 = dma.vmem_to_smem %s40, 16, [#allocation5], [#allocation6]
    $region25: #{policy_head.1} parent=1 // pred_fallthru
      _
    // Predicated region
    $region26: #{policy_head.1} parent=1 // pred_check
      _
    $region27: #{policy_head.1} parent=1 // pred_check_branch
      %44 = sbr.rel (0) target = $region29
    $region28: #{policy_head.1} parent=1 // pred_region
      %s46 = ssub.s32 16, 16
      %47 = vsyncadd [#allocation6], %s46
      %s49 = sshll.u32 %s6, 4
      %s50 = int_to_ptr.vmem [resolvable:$true] %s49
      %52 = dma.vmem_to_smem %s50, 16, [#allocation7], [#allocation6]
    $region29: #{policy_head.1} parent=1 // pred_fallthru
      _
    // Predicated region
    $region30: #{policy_head.1} parent=1 // pred_check
      _
    $region31: #{policy_head.1} parent=1 // pred_check_branch
      %54 = sbr.rel (0) target = $region33
    $region32: #{policy_head.1} parent=1 // pred_region
      %55 = dma.done [#allocation4], 32
    $region33: #{policy_head.1} parent=1 // pred_fallthru
      _
    // Predicated region
    $region34: #{policy_head.1} parent=1 // pred_check
      _
    $region35: #{policy_head.1} parent=1 // pred_check_branch
      %57 = sbr.rel (0) target = $region37
    $region36: #{policy_head.1} parent=1 // pred_region
      %58 = dma.done [#allocation6], 16
    $region37: #{policy_head.1} parent=1 // pred_fallthru
      _
    // Predicated region
    $region38: #{policy_head.1} parent=1 // pred_check
      _
    $region39: #{policy_head.1} parent=1 // pred_check_branch
      %60 = sbr.rel (0) target = $region41
    $region40: #{policy_head.1} parent=1 // pred_region
      %61 = dma.done [#allocation6], 16
    $region41: #{policy_head.1} parent=1 // pred_fallthru
      _
    %62 = sfence
    %v63 = vld [vmem:[%s0] sm:$0xff]
    %s64 = scalar_lea.vmem %s0, 8
    %v65 = vld [vmem:[%s64] sm:$0xff]
    %s66 = scalar_lea.vmem %s0, 16
    %v67 = vld [vmem:[%s66] sm:$0xff]
    %s68 = scalar_lea.vmem %s0, 24
    %v69 = vld [vmem:[%s68] sm:$0xff]
    %s70 = scalar_lea.vmem %s0, 32
    %v71 = vld [vmem:[%s70] sm:$0xff]
    %s72 = scalar_lea.vmem %s0, 40
    %v73 = vld [vmem:[%s72] sm:$0xff]
    %s74 = scalar_lea.vmem %s0, 48
    %v75 = vld [vmem:[%s74] sm:$0xff]
    %s76 = scalar_lea.vmem %s0, 56
    %v77 = vld [vmem:[%s76] sm:$0xff]
    %s78 = sld [smem:[#allocation2]]
    %v79 = vstv %s78
    %v80 = vmul.f32 %v79, %v63
    %s81 = sld [smem:[#allocation2 + $0x1]]
    %v82 = vstv %s81
    %v83 = vmul.f32 %v82, %v65
    %v84 = vadd.f32 %v80, %v83
    %s85 = sld [smem:[#allocation2 + $0x2]]
    %v86 = vstv %s85
    %v87 = vmul.f32 %v86, %v67
    %v88 = vadd.f32 %v84, %v87
    %s89 = sld [smem:[#allocation2 + $0x3]]
    %v90 = vstv %s89
    %v91 = vmul.f32 %v90, %v69
    %v92 = vadd.f32 %v88, %v91
    %s93 = sld [smem:[#allocation2 + $0x4]]
    %v94 = vstv %s93
    %v95 = vmul.f32 %v94, %v71
    %v96 = vadd.f32 %v92, %v95
    %s97 = sld [smem:[#allocation2 + $0x5]]
    %v98 = vstv %s97
    %v99 = vmul.f32 %v98, %v73
    %v100 = vadd.f32 %v96, %v99
    %s101 = sld [smem:[#allocation2 + $0x6]]
    %v102 = vstv %s101
    %v103 = vmul.f32 %v102, %v75
    %v104 = vadd.f32 %v100, %v103
    %s105 = sld [smem:[#allocation2 + $0x7]]
    %v106 = vstv %s105
    %v107 = vmul.f32 %v106, %v77
    %v108 = vadd.f32 %v104, %v107
    %s109 = sld [smem:[#allocation2 + $0x80]]
    %v110 = vstv %s109
    %v111 = vmul.f32 %v110, %v63
    %s112 = sld [smem:[#allocation2 + $0x81]]
    %v113 = vstv %s112
    %v114 = vmul.f32 %v113, %v65
    %v115 = vadd.f32 %v111, %v114
    %s116 = sld [smem:[#allocation2 + $0x82]]
    %v117 = vstv %s116
    %v118 = vmul.f32 %v117, %v67
    %v119 = vadd.f32 %v115, %v118
    %s120 = sld [smem:[#allocation2 + $0x83]]
    %v121 = vstv %s120
    %v122 = vmul.f32 %v121, %v69
    %v123 = vadd.f32 %v119, %v122
    %s124 = sld [smem:[#allocation2 + $0x84]]
    %v125 = vstv %s124
    %v126 = vmul.f32 %v125, %v71
    %v127 = vadd.f32 %v123, %v126
    %s128 = sld [smem:[#allocation2 + $0x85]]
    %v129 = vstv %s128
    %v130 = vmul.f32 %v129, %v73
    %v131 = vadd.f32 %v127, %v130
    %s132 = sld [smem:[#allocation2 + $0x86]]
    %v133 = vstv %s132
    %v134 = vmul.f32 %v133, %v75
    %v135 = vadd.f32 %v131, %v134
    %s136 = sld [smem:[#allocation2 + $0x87]]
    %v137 = vstv %s136
    %v138 = vmul.f32 %v137, %v77
    %v139 = vadd.f32 %v135, %v138
    %v140 = vld [vmem:[%s1] sm:$0xff]
    %v141 = vld [vmem:[%s1 + $0x8] sm:$0xff]
    %v142 = vld [vmem:[%s1 + $0x10] sm:$0xff]
    %v143 = vld [vmem:[%s1 + $0x18] sm:$0xff]
    %v144 = vld [vmem:[%s1 + $0x20] sm:$0xff]
    %v145 = vld [vmem:[%s1 + $0x28] sm:$0xff]
    %v146 = vld [vmem:[%s1 + $0x30] sm:$0xff]
    %v147 = vld [vmem:[%s1 + $0x38] sm:$0xff]
    %vm148 = vcmask 523264
    %v150 = vsel %vm148, %v108, 0
    %152 = vmatprep.subr.mxu0 0.0
    %153 = vmatpush1.msra.mxu0 %v140
    %154 = vmatprep.subr.mxu0 0.0
    %155 = vmatpush1.msra.mxu0 %v141
    %156 = vmatprep.subr.mxu0 0.0
    %157 = vmatpush1.msra.mxu0 %v142
    %158 = vmatprep.subr.mxu0 0.0
    %159 = vmatpush1.msra.mxu0 %v143
    %160 = vmatprep.subr.mxu0 0.0
    %161 = vmatpush1.msra.mxu0 %v144
    %162 = vmatprep.subr.mxu0 0.0
    %163 = vmatpush1.msra.mxu0 %v145
    %164 = vmatprep.subr.mxu0 0.0
    %165 = vmatpush1.msra.mxu0 %v146
    %166 = vmatprep.subr.mxu0 0.0
    %167 = vmatpush1.msra.mxu0 %v147
    %168 = vmatprep.subr.mxu0 0.0
    %169 = vmatpush1.msra.mxu0 0.0
    %170 = vmatprep.subr.mxu0 0.0
    %171 = vmatpush1.msra.mxu0 0.0
    %172 = vmatprep.subr.mxu0 0.0
    %173 = vmatpush1.msra.mxu0 0.0
    %174 = vmatprep.subr.mxu0 0.0
    %175 = vmatpush1.msra.mxu0 0.0
    %176 = vmatprep.subr.mxu0 0.0
    %177 = vmatpush1.msra.mxu0 0.0
    %178 = vmatprep.subr.mxu0 0.0
    %179 = vmatpush1.msra.mxu0 0.0
    %180 = vmatprep.subr.mxu0 0.0
    %181 = vmatpush1.msra.mxu0 0.0
    %182 = vmatprep.subr.mxu0 0.0
    %183 = vmatpush1.msra.mxu0 0.0
    %184 = vmatprep.subr.mxu0 0.0
    %185 = vmatpush1.msra.mxu0 0.0
    %186 = vmatprep.subr.mxu0 0.0
    %187 = vmatpush1.msra.mxu0 0.0
    %188 = vmatprep.subr.mxu0 0.0
    %189 = vmatpush1.msra.mxu0 0.0
    %190 = vmatprep.subr.mxu0 0.0
    %191 = vmatpush1.msra.mxu0 0.0
    %192 = vmatprep.subr.mxu0 0.0
    %193 = vmatpush1.msra.mxu0 0.0
    %194 = vmatprep.subr.mxu0 0.0
    %195 = vmatpush1.msra.mxu0 0.0
    %196 = vmatprep.subr.mxu0 0.0
    %197 = vmatpush1.msra.mxu0 0.0
    %198 = vmatprep.subr.mxu0 0.0
    %199 = vmatpush1.msra.mxu0 0.0
    %200 = vmatprep.subr.mxu0 0.0
    %201 = vmatpush1.msra.mxu0 0.0
    %202 = vmatprep.subr.mxu0 0.0
    %203 = vmatpush1.msra.mxu0 0.0
    %204 = vmatprep.subr.mxu0 0.0
    %205 = vmatpush1.msra.mxu0 0.0
    %206 = vmatprep.subr.mxu0 0.0
    %207 = vmatpush1.msra.mxu0 0.0
    %208 = vmatprep.subr.mxu0 0.0
    %209 = vmatpush1.msra.mxu0 0.0
    %210 = vmatprep.subr.mxu0 0.0
    %211 = vmatpush1.msra.mxu0 0.0
    %212 = vmatprep.subr.mxu0 0.0
    %213 = vmatpush1.msra.mxu0 0.0
    %214 = vmatprep.subr.mxu0 0.0
    %215 = vmatpush1.msra.mxu0 0.0
    %216 = vmatprep.mubr.f32.mxu0 0.0
    %217 = vmatmul.mubr.f32.gmra.mrb[0].mxu0 %v150
    %v218 = vpop.f32.mrb[0].mxu0
    %v219 = vadd.f32 0.0, %v218
    %v220 = vpop.f32.mrb[0].mxu0
    %221 = vdwg.mxu0
    %s222 = scalar_lea.vmem %s1, 64
    %v223 = vld [vmem:[%s222] sm:$0xff]
    %v224 = vld [vmem:[%s222 + $0x8] sm:$0xff]
    %v225 = vld [vmem:[%s222 + $0x10] sm:$0xff]
    %v226 = vld [vmem:[%s222 + $0x18] sm:$0xff]
    %v227 = vld [vmem:[%s222 + $0x20] sm:$0xff]
    %v228 = vld [vmem:[%s222 + $0x28] sm:$0xff]
    %v229 = vld [vmem:[%s222 + $0x30] sm:$0xff]
    %v230 = vld [vmem:[%s222 + $0x38] sm:$0xff]
    %v232 = vsel %vm148, %v139, 0
    %234 = vmatprep.subr.mxu0 0.0
    %235 = vmatpush1.msra.mxu0 %v223
    %236 = vmatprep.subr.mxu0 0.0
    %237 = vmatpush1.msra.mxu0 %v224
    %238 = vmatprep.subr.mxu0 0.0
    %239 = vmatpush1.msra.mxu0 %v225
    %240 = vmatprep.subr.mxu0 0.0
    %241 = vmatpush1.msra.mxu0 %v226
    %242 = vmatprep.subr.mxu0 0.0
    %243 = vmatpush1.msra.mxu0 %v227
    %244 = vmatprep.subr.mxu0 0.0
    %245 = vmatpush1.msra.mxu0 %v228
    %246 = vmatprep.subr.mxu0 0.0
    %247 = vmatpush1.msra.mxu0 %v229
    %248 = vmatprep.subr.mxu0 0.0
    %249 = vmatpush1.msra.mxu0 %v230
    %250 = vmatprep.subr.mxu0 0.0
    %251 = vmatpush1.msra.mxu0 0.0
    %252 = vmatprep.subr.mxu0 0.0
    %253 = vmatpush1.msra.mxu0 0.0
    %254 = vmatprep.subr.mxu0 0.0
    %255 = vmatpush1.msra.mxu0 0.0
    %256 = vmatprep.subr.mxu0 0.0
    %257 = vmatpush1.msra.mxu0 0.0
    %258 = vmatprep.subr.mxu0 0.0
    %259 = vmatpush1.msra.mxu0 0.0
    %260 = vmatprep.subr.mxu0 0.0
    %261 = vmatpush1.msra.mxu0 0.0
    %262 = vmatprep.subr.mxu0 0.0
    %263 = vmatpush1.msra.mxu0 0.0
    %264 = vmatprep.subr.mxu0 0.0
    %265 = vmatpush1.msra.mxu0 0.0
    %266 = vmatprep.subr.mxu0 0.0
    %267 = vmatpush1.msra.mxu0 0.0
    %268 = vmatprep.subr.mxu0 0.0
    %269 = vmatpush1.msra.mxu0 0.0
    %270 = vmatprep.subr.mxu0 0.0
    %271 = vmatpush1.msra.mxu0 0.0
    %272 = vmatprep.subr.mxu0 0.0
    %273 = vmatpush1.msra.mxu0 0.0
    %274 = vmatprep.subr.mxu0 0.0
    %275 = vmatpush1.msra.mxu0 0.0
    %276 = vmatprep.subr.mxu0 0.0
    %277 = vmatpush1.msra.mxu0 0.0
    %278 = vmatprep.subr.mxu0 0.0
    %279 = vmatpush1.msra.mxu0 0.0
    %280 = vmatprep.subr.mxu0 0.0
    %281 = vmatpush1.msra.mxu0 0.0
    %282 = vmatprep.subr.mxu0 0.0
    %283 = vmatpush1.msra.mxu0 0.0
    %284 = vmatprep.subr.mxu0 0.0
    %285 = vmatpush1.msra.mxu0 0.0
    %286 = vmatprep.subr.mxu0 0.0
    %287 = vmatpush1.msra.mxu0 0.0
    %288 = vmatprep.subr.mxu0 0.0
    %289 = vmatpush1.msra.mxu0 0.0
    %290 = vmatprep.subr.mxu0 0.0
    %291 = vmatpush1.msra.mxu0 0.0
    %292 = vmatprep.subr.mxu0 0.0
    %293 = vmatpush1.msra.mxu0 0.0
    %294 = vmatprep.subr.mxu0 0.0
    %295 = vmatpush1.msra.mxu0 0.0
    %296 = vmatprep.subr.mxu0 0.0
    %297 = vmatpush1.msra.mxu0 0.0
    %298 = vmatprep.mubr.f32.mxu0 0.0
    %299 = vmatmul.mubr.f32.gmra.mrb[0].mxu0 %v232
    %v300 = vpop.f32.mrb[0].mxu0
    %v301 = vadd.f32 0.0, %v300
    %v302 = vpop.f32.mrb[0].mxu0
    %303 = vdwg.mxu0
    %v304 = vsel %vm148, %v108, 0.0
    %305 = vadd.xlane.f32.xlu0 %v304
    %v306 = vpop.xlane.xlu0 %305
    %v307 = vrot.slane %v306, 4
    %v308 = vadd.f32 %v306, %v307
    %v309 = vrot.slane %v308, 2
    %v310 = vadd.f32 %v308, %v309
    %v311 = vrot.slane %v310, 1
    %v312 = vadd.f32 %v310, %v311
    %s313 = vtos %v312
    %s314 = smul.f32 %s313, 0.001953125
    %v315 = vstv %s314
    %v316 = vsub.f32 %v108, %v315
    %v317 = vmul.f32 %v316, %v316
    %v318 = vsel %vm148, %v317, 0.0
    %319 = vadd.xlane.f32.xlu0 %v318
    %v320 = vpop.xlane.xlu0 %319
    %v321 = vrot.slane %v320, 4
    %v322 = vadd.f32 %v320, %v321
    %v323 = vrot.slane %v322, 2
    %v324 = vadd.f32 %v322, %v323
    %v325 = vrot.slane %v324, 1
    %v326 = vadd.f32 %v324, %v325
    %s327 = vtos %v326
    %s328 = smul.f32 %s327, 0.001953125
    %s329 = sld [smem:[#allocation5]]
    %s330 = sadd.f32 %s328, 1e-05
    %v331 = vstv %s330
    %v332 = vrsqrt.pop %v331
    %s333 = vtos %v332
    %s334 = smul.f32 %s329, %s333
    %s335 = sld [smem:[#allocation7]]
    %s336 = smul.f32 %s314, %s334
    %s337 = ssub.f32 %s335, %s336
    %v338 = vsel %vm148, %v139, 0.0
    %339 = vadd.xlane.f32.xlu0 %v338
    %v340 = vpop.xlane.xlu0 %339
    %v341 = vrot.slane %v340, 4
    %v342 = vadd.f32 %v340, %v341
    %v343 = vrot.slane %v342, 2
    %v344 = vadd.f32 %v342, %v343
    %v345 = vrot.slane %v344, 1
    %v346 = vadd.f32 %v344, %v345
    %s347 = vtos %v346
    %s348 = smul.f32 %s347, 0.001953125
    %v349 = vstv %s348
    %v350 = vsub.f32 %v139, %v349
    %v351 = vmul.f32 %v350, %v350
    %v352 = vsel %vm148, %v351, 0.0
    %353 = vadd.xlane.f32.xlu0 %v352
    %v354 = vpop.xlane.xlu0 %353
    %v355 = vrot.slane %v354, 4
    %v356 = vadd.f32 %v354, %v355
    %v357 = vrot.slane %v356, 2
    %v358 = vadd.f32 %v356, %v357
    %v359 = vrot.slane %v358, 1
    %v360 = vadd.f32 %v358, %v359
    %s361 = vtos %v360
    %s362 = smul.f32 %s361, 0.001953125
    %s363 = sld [smem:[#allocation5 + $0x1]]
    %s364 = sadd.f32 %s362, 1e-05
    %v365 = vstv %s364
    %v366 = vrsqrt.pop %v365
    %s367 = vtos %v366
    %s368 = smul.f32 %s363, %s367
    %s369 = sld [smem:[#allocation7 + $0x1]]
    %s370 = smul.f32 %s348, %s368
    %s371 = ssub.f32 %s369, %s370
    %v372 = vld [vmem:[%s2] sm:$0x1]
    %v373 = vstv %s337
    %v374 = vmul.f32 %v373, %v372
    %v375 = vld [vmem:[%s2 + $0x1] sm:$0x1]
    %v376 = vstv %s371
    %v377 = vmul.f32 %v376, %v375
    %v378 = vadd.f32 %v374, %v377
    %v379 = vld [vmem:[%s3] sm:$0x1]
    %v380 = vadd.f32 %v378, %v379
    %v381 = vstv %s334
    %v382 = vmul.f32 %v381, %v219
    %v383 = vstv %s368
    %v384 = vmul.f32 %v383, %v301
    %v385 = vadd.f32 %v382, %v384
    %v386 = vlaneseq
    %v387 = vshrl.u32 %v386, 7
    %v388 = vsub.s32 0, %v387
    %v389 = vrot.slane %v380, %v388
    %v390 = vadd.f32 %v385, %v389
    %v391 = vsel %vm148, %v390, -inf
    %392 = vmax.xlane.f32.xlu0 %v391
    %v393 = vpop.xlane.xlu0 %392
    %v394 = vsub.f32 %v390, %v393
    %v395 = vmul.f32 %v394, 1.442695
    %v396 = vpow.pop %v395
    %v397 = vsel %vm148, %v396, 0.0
    %398 = vadd.xlane.f32.xlu0 %v397
    %v399 = vpop.xlane.xlu0 %398
    %v400 = vrcp.pop %v399
    %v401 = vmul.f32 %v396, %v400
    %402 = vst.msk [vmem:[#allocation8] sm:$0xff] %vm148, %v401
    // Predicated region
    $region42: #{policy_head.1} parent=1 // pred_check
      _
    $region43: #{policy_head.1} parent=1 // pred_check_branch
      %404 = sbr.rel (0) target = $region45
    $region44: #{policy_head.1} parent=1 // pred_region
      %s406 = ssub.s32 128, 128
      %407 = vsyncadd [#allocation3], %s406
      %s409 = sshll.u32 [#allocation8], 4
      %s410 = int_to_ptr.vmem [resolvable:$true] %s409
      %412 = dma.vmem_to_hbm [thread:$0]  %s410, 128, %s7, [#allocation3]
    $region45: #{policy_head.1} parent=1 // pred_fallthru
      _
    // Predicated region
    $region46: #{policy_head.1} parent=1 // pred_check
      _
    $region47: #{policy_head.1} parent=1 // pred_check_branch
      %414 = sbr.rel (0) target = $region49
    $region48: #{policy_head.1} parent=1 // pred_region
      %415 = dma.done [#allocation3], 128
    $region49: #{policy_head.1} parent=1 // pred_fallthru
      _
    %416 = vsyncpa [#allocation3], 1
    %417 = vsyncpa [#allocation4], 1
    %418 = vsyncpa [#allocation6], 1

</llo_original>
